<compile_context>
chip_gen: v5e
topology: v5e:2x2
jax: 0.10.0
libtpu: 0.0.40
codegen_flags: <defaults>
</compile_context>

<pallas_src>
import functools

import jax
import jax.numpy as jnp
from jax.experimental import pallas as pl
from jax.experimental.pallas import tpu as pltpu


def _classifier_kernel(x_ref, molh_ref, w1x_ref, w2_ref, b2_ref, o_ref):
    # x_ref:    (TM, out_dim)  gathered token features (compute dtype)
    # molh_ref: (TM, H)        precomputed molvec @ W1_mol + b1 (f32)
    # w1x_ref:  (out_dim, H)   token half of fc1 weight (compute dtype)
    # w2_ref:   (H, H)         fc2 weight (compute dtype)
    # b2_ref:   (1, H)         fc2 bias (f32)
    # o_ref:    (TM, H)        output (f32)
    h = jnp.dot(x_ref[...], w1x_ref[...], preferred_element_type=jnp.float32)
    h = jnp.maximum(h + molh_ref[...], 0.0)        # fc1 + ReLU (dropout == identity)
    h = h.astype(w2_ref.dtype)                     # back to MXU operand dtype
    o = jnp.dot(h, w2_ref[...], preferred_element_type=jnp.float32) + b2_ref[...]
    o_ref[...] = o.astype(o_ref.dtype)


def _round_up(x, m):
    return ((x + m - 1) // m) * m


@functools.partial(jax.jit, static_argnames=("compute_dtype", "max_tile_m"))
def classifier_forward(X, molvec, idx_M, w1, b1, w2, b2, *,
                       compute_dtype=jnp.bfloat16, max_tile_m=512):
    """Replicates Classifier.forward.  Returns (B * M, in_dim) float32."""
    B, S, out_dim = X.shape
    M = idx_M.shape[1]
    molvec_dim = molvec.shape[-1]
    hidden = w1.shape[1]
    n_rows = B * M

    # --- split fc1: W1 = [W1_x ; W1_mol] (stored (in, out)) -----------------
    w1_x = w1[:out_dim]                      # (out_dim, H)
    w1_m = w1[out_dim:]                      # (molvec_dim, H)

    # molvec contribution of fc1, computed once per batch element, with b1
    # folded in.  Kept in f32 (it is added to the f32 accumulator in-kernel).
    mol_h = jnp.dot(molvec.astype(jnp.float32), w1_m.astype(jnp.float32),
                    precision=jax.lax.Precision.HIGHEST) + b1       # (B, H)
    mol_h_rows = jnp.broadcast_to(mol_h[:, None, :], (B, M, hidden))
    mol_h_rows = mol_h_rows.reshape(n_rows, hidden)

    # gather masked-token rows of X (cheap glue, stays in plain JAX)
    target_x = jnp.take_along_axis(X, idx_M[:, :, None], axis=1)     # (B, M, out_dim)
    target_x = target_x.reshape(n_rows, out_dim).astype(compute_dtype)

    w1_x_c = w1_x.astype(compute_dtype)
    w2_c = w2.astype(compute_dtype)
    b2_2d = b2.reshape(1, hidden).astype(jnp.float32)

    # --- adaptive row tiling ------------------------------------------------
    # Large tiles fill the MXU and amortize per-grid-step overhead; keep the
    # tile sublane-aligned (8 rows for f32, 16 for bf16) and balance tiles so
    # only the tail tile carries padding.
    row_align = 8 * (4 // jnp.dtype(compute_dtype).itemsize)
    num_tiles = pl.cdiv(n_rows, max_tile_m)
    tile_m = _round_up(pl.cdiv(n_rows, num_tiles), row_align)
    n_padded = num_tiles * tile_m
    pad = n_padded - n_rows
    if pad:
        target_x = jnp.pad(target_x, ((0, pad), (0, 0)))
        mol_h_rows = jnp.pad(mol_h_rows, ((0, pad), (0, 0)))

    itemsize = jnp.dtype(compute_dtype).itemsize
    cost = pl.CostEstimate(
        flops=2 * n_padded * out_dim * hidden + 2 * n_padded * hidden * hidden,
        transcendentals=0,
        bytes_accessed=int(n_padded * out_dim * itemsize          # x
                           + n_padded * hidden * 4                # mol_h rows
                           + out_dim * hidden * itemsize          # W1_x
                           + hidden * hidden * itemsize           # W2
                           + hidden * 4                           # b2
                           + n_padded * hidden * 4),              # out
    )

    out = pl.pallas_call(
        _classifier_kernel,
        out_shape=jax.ShapeDtypeStruct((n_padded, hidden), jnp.float32),
        grid_spec=pltpu.PrefetchScalarGridSpec(
            num_scalar_prefetch=0,
            grid=(num_tiles,),
            in_specs=[
                pl.BlockSpec((tile_m, out_dim), lambda i: (i, 0)),
                pl.BlockSpec((tile_m, hidden), lambda i: (i, 0)),
                pl.BlockSpec((out_dim, hidden), lambda i: (0, 0)),
                pl.BlockSpec((hidden, hidden), lambda i: (0, 0)),
                pl.BlockSpec((1, hidden), lambda i: (0, 0)),
            ],
            out_specs=pl.BlockSpec((tile_m, hidden), lambda i: (i, 0)),
        ),
        compiler_params=pltpu.CompilerParams(
            dimension_semantics=("parallel",),
        ),
        cost_estimate=cost,
    )(target_x, mol_h_rows, w1_x_c, w2_c, b2_2d)

    return out[:n_rows]


def init_params(key, in_dim, out_dim, molvec_dim):
    """Deterministic parameter init mirroring the PyTorch module:
    xavier_normal_ on weights, default Linear bias init (uniform +-1/sqrt(fan_in))."""
    d_in = molvec_dim + out_dim
    k1, k2, k3, k4 = jax.random.split(key, 4)

    def xavier_normal(k, fan_in, fan_out):
        std = (2.0 / (fan_in + fan_out)) ** 0.5
        # stored as (fan_in, fan_out), i.e. PyTorch weight transposed
        return std * jax.random.normal(k, (fan_in, fan_out), dtype=jnp.float32)

    def bias_init(k, fan_in, fan_out):
        bound = 1.0 / (fan_in ** 0.5)
        return jax.random.uniform(k, (fan_out,), minval=-bound, maxval=bound,
                                  dtype=jnp.float32)

    w1 = xavier_normal(k1, d_in, in_dim)
    b1 = bias_init(k2, d_in, in_dim)
    w2 = xavier_normal(k3, in_dim, in_dim)
    b2 = bias_init(k4, in_dim, in_dim)
    return w1, b1, w2, b2


if __name__ == "__main__":
    # small shapes consistent with the module
    batch = 2
    seq = 8
    out_dim = 64       # feature dim of X rows
    molvec_dim = 64
    in_dim = 128       # hidden / output dim of the classifier
    num_masking = 4
    vocab_size = 16    # unused in forward (fc2 maps in_dim -> in_dim)

    key = jax.random.PRNGKey(0)
    kx, km, ki, kp = jax.random.split(key, 4)

    X = jax.random.normal(kx, (batch, seq, out_dim), dtype=jnp.float32)
    molvec = jax.random.normal(km, (batch, molvec_dim), dtype=jnp.float32)
    idx_M = jax.random.randint(ki, (batch, num_masking), 0, seq, dtype=jnp.int32)

    w1, b1, w2, b2 = init_params(kp, in_dim, out_dim, molvec_dim)

    # pure-JAX reference of the same math (full-precision f32)
    target_x = jnp.take_along_axis(X, idx_M[:, :, None], axis=1)
    molvec_e = jnp.broadcast_to(molvec[:, None, :], (batch, num_masking, molvec_dim))
    cx = jnp.concatenate([target_x, molvec_e], axis=-1).reshape(batch * num_masking, -1)
    ref_h = jnp.maximum(
        jnp.dot(cx, w1, precision=jax.lax.Precision.HIGHEST) + b1, 0.0)
    ref = jnp.dot(ref_h, w2, precision=jax.lax.Precision.HIGHEST) + b2

    # f32-operand kernel: exact-math check
    pred_f32 = classifier_forward(X, molvec, idx_M, w1, b1, w2, b2,
                                  compute_dtype=jnp.float32)
    jax.block_until_ready(pred_f32)
    assert pred_f32.shape == (batch * num_masking, in_dim), pred_f32.shape
    assert jnp.allclose(pred_f32, ref, atol=1e-4, rtol=1e-4)

    # default bf16-operand / f32-accumulate kernel (v6e / v7x fast path)
    pred = classifier_forward(X, molvec, idx_M, w1, b1, w2, b2)
    jax.block_until_ready(pred)
    assert pred.shape == (batch * num_masking, in_dim), pred.shape
    assert jnp.allclose(pred, ref, atol=5e-2, rtol=5e-2)

    print("KERNEL_OK")
</pallas_src>

<mosaic_0001>
module attributes {stable_mosaic.version = 11 : i64} {
  func.func @_classifier_kernel(%arg0: i32, %arg1: memref<8x64xf32, #tpu.memory_space<vmem>>, %arg2: memref<8x128xf32, #tpu.memory_space<vmem>>, %arg3: memref<64x128xf32, #tpu.memory_space<vmem>>, %arg4: memref<128x128xf32, #tpu.memory_space<vmem>>, %arg5: memref<1x128xf32, #tpu.memory_space<vmem>>, %arg6: memref<8x128xf32, #tpu.memory_space<vmem>>) attributes {dimension_semantics = [#tpu.dimension_semantics<parallel>], iteration_bounds = array<i64: 1>, scalar_prefetch = 0 : i64, scratch_operands = 0 : i64, tpu.core_type = #tpu.core_type<tc>, window_params = [{transform_indices = @transform_0, window_bounds = array<i64: 8, 64>}, {transform_indices = @transform_1, window_bounds = array<i64: 8, 128>}, {pipeline_mode = #tpu.pipeline_mode<synchronous>, transform_indices = @transform_2, window_bounds = array<i64: 64, 128>}, {pipeline_mode = #tpu.pipeline_mode<synchronous>, transform_indices = @transform_3, window_bounds = array<i64: 128, 128>}, {pipeline_mode = #tpu.pipeline_mode<synchronous>, transform_indices = @transform_4, window_bounds = array<i64: 1, 128>}, {transform_indices = @transform_5, window_bounds = array<i64: 8, 128>}]} {
    %c0 = arith.constant 0 : index
    %c0_0 = arith.constant 0 : index
    %0 = vector.load %arg1[%c0, %c0_0] : memref<8x64xf32, #tpu.memory_space<vmem>>, vector<8x64xf32>
    %c0_1 = arith.constant 0 : index
    %c0_2 = arith.constant 0 : index
    %1 = vector.load %arg3[%c0_1, %c0_2] : memref<64x128xf32, #tpu.memory_space<vmem>>, vector<64x128xf32>
    %cst = arith.constant dense<0.000000e+00> : vector<8x128xf32>
    %2 = tpu.matmul %0, %1, %cst {dimension_numbers = #tpu.dot_dimension_numbers<[1], [0], [0], [1], [0, 0, 1, 1], [], []>} : vector<8x64xf32>, vector<64x128xf32>, vector<8x128xf32> -> vector<8x128xf32>
    %c0_3 = arith.constant 0 : index
    %c0_4 = arith.constant 0 : index
    %3 = vector.load %arg2[%c0_3, %c0_4] : memref<8x128xf32, #tpu.memory_space<vmem>>, vector<8x128xf32>
    %4 = arith.addf %2, %3 : vector<8x128xf32>
    %cst_5 = arith.constant 0.000000e+00 : f32
    %5 = vector.broadcast %cst_5 : f32 to vector<8x128xf32>
    %6 = arith.maximumf %4, %5 : vector<8x128xf32>
    %c0_6 = arith.constant 0 : index
    %c0_7 = arith.constant 0 : index
    %7 = vector.load %arg4[%c0_6, %c0_7] : memref<128x128xf32, #tpu.memory_space<vmem>>, vector<128x128xf32>
    %cst_8 = arith.constant dense<0.000000e+00> : vector<8x128xf32>
    %8 = tpu.matmul %6, %7, %cst_8 {dimension_numbers = #tpu.dot_dimension_numbers<[1], [0], [0], [1], [0, 0, 1, 1], [], []>} : vector<8x128xf32>, vector<128x128xf32>, vector<8x128xf32> -> vector<8x128xf32>
    %c0_9 = arith.constant 0 : index
    %c0_10 = arith.constant 0 : index
    %9 = vector.load %arg5[%c0_9, %c0_10] : memref<1x128xf32, #tpu.memory_space<vmem>>, vector<1x128xf32>
    %10 = vector.broadcast %9 : vector<1x128xf32> to vector<8x128xf32>
    %11 = arith.addf %8, %10 : vector<8x128xf32>
    %c0_11 = arith.constant 0 : index
    %c0_12 = arith.constant 0 : index
    %12 = vector.load %arg6[%c0_11, %c0_12] : memref<8x128xf32, #tpu.memory_space<vmem>>, vector<8x128xf32>
    tpu.vector_store %arg6[%c0_11, %c0_12], %11 {strides = array<i32>} : memref<8x128xf32, #tpu.memory_space<vmem>>, vector<8x128xf32>,
    return
  }
  func.func @transform_0(%arg0: i32) -> (i32, i32) {
    %c0_i32 = arith.constant 0 : i32
    %c0_i32_0 = arith.constant 0 : i32
    return %arg0, %c0_i32 : i32, i32
  }
  func.func @transform_1(%arg0: i32) -> (i32, i32) {
    %c0_i32 = arith.constant 0 : i32
    %c0_i32_0 = arith.constant 0 : i32
    return %arg0, %c0_i32 : i32, i32
  }
  func.func @transform_2(%arg0: i32) -> (i32, i32) {
    %c0_i32 = arith.constant 0 : i32
    %c0_i32_0 = arith.constant 0 : i32
    %c0_i32_1 = arith.constant 0 : i32
    return %c0_i32, %c0_i32_0 : i32, i32
  }
  func.func @transform_3(%arg0: i32) -> (i32, i32) {
    %c0_i32 = arith.constant 0 : i32
    %c0_i32_0 = arith.constant 0 : i32
    %c0_i32_1 = arith.constant 0 : i32
    return %c0_i32, %c0_i32_0 : i32, i32
  }
  func.func @transform_4(%arg0: i32) -> (i32, i32) {
    %c0_i32 = arith.constant 0 : i32
    %c0_i32_0 = arith.constant 0 : i32
    %c0_i32_1 = arith.constant 0 : i32
    return %c0_i32, %c0_i32_0 : i32, i32
  }
  func.func @transform_5(%arg0: i32) -> (i32, i32) {
    %c0_i32 = arith.constant 0 : i32
    %c0_i32_0 = arith.constant 0 : i32
    return %arg0, %c0_i32 : i32, i32
  }
}

</mosaic_0001>

<llo_original>
// kernel: classifier_forward.1
$region0: #{classifier_forward.1}
  #allocation0 [shape = 'u32[]', space=smem, size = 0x4, offset = 0x4, fixed_abs, tag = 'smem constant byte address 0x4 - core index']
  #allocation1 [shape = 'u32[72,128]{1,0:T(1,128)}', space=vmem, size = 0x9000, scoped, tag = 'internal scratch']
  %s0 = inlined_call_operand.vmem [shape: f32[8,64], index: 0, kind: input, shape index: {}]
  %s1 = inlined_call_operand.vmem [shape: f32[8,128], index: 1, kind: input, shape index: {}]
  %s2 = inlined_call_operand.vmem [shape: f32[64,128], index: 2, kind: input, shape index: {}]
  %s3 = inlined_call_operand.vmem [shape: f32[128,128], index: 3, kind: input, shape index: {}]
  %s4 = inlined_call_operand.vmem [shape: f32[1,128], index: 4, kind: input, shape index: {}]
  %s5 = inlined_call_operand.hbm [shape: f32[8,128], index: 5, kind: output, shape index: {}]
  %s6 = sld [smem:[#allocation0]]
  $region30: #{classifier_forward.1} parent=0
    _
  %s8 = ssub.s32 1, %s6
  %s9 = scalar_select 0, %s8, %s6
  $region1: #{classifier_forward.1} parent=0
    #allocation2 [shape = 'u8[4096]{0}', space=vmem, size = 0x1000, scoped, tag = 'output window, operand 0, single buffered']
    #allocation3 [shape = 's32[1]{0}', space=sflag, size = 0x4, scoped, tag = 'scoped memory for classifier_forward.1']
    %10 = vsyncpa [#allocation3], 0
    // Predicated region
    $region2: #{classifier_forward.1} parent=1 // pred_check
      _
    $region3: #{classifier_forward.1} parent=1 // pred_check_branch
      %12 = sbr.rel (0) target = $region5
    $region4: #{classifier_forward.1} parent=1 // pred_region
      _
    $region5: #{classifier_forward.1} parent=1 // pred_fallthru
      _
    // Predicated region
    $region6: #{classifier_forward.1} parent=1 // pred_check
      _
    $region7: #{classifier_forward.1} parent=1 // pred_check_branch
      %14 = sbr.rel (0) target = $region9
    $region8: #{classifier_forward.1} parent=1 // pred_region
      _
    $region9: #{classifier_forward.1} parent=1 // pred_fallthru
      _
    // Predicated region
    $region10: #{classifier_forward.1} parent=1 // pred_check
      _
    $region11: #{classifier_forward.1} parent=1 // pred_check_branch
      %16 = sbr.rel (0) target = $region13
    $region12: #{classifier_forward.1} parent=1 // pred_region
      _
    $region13: #{classifier_forward.1} parent=1 // pred_fallthru
      _
    // Predicated region
    $region14: #{classifier_forward.1} parent=1 // pred_check
      _
    $region15: #{classifier_forward.1} parent=1 // pred_check_branch
      %18 = sbr.rel (0) target = $region17
    $region16: #{classifier_forward.1} parent=1 // pred_region
      _
    $region17: #{classifier_forward.1} parent=1 // pred_fallthru
      _
    // Predicated region
    $region18: #{classifier_forward.1} parent=1 // pred_check
      _
    $region19: #{classifier_forward.1} parent=1 // pred_check_branch
      %20 = sbr.rel (0) target = $region21
    $region20: #{classifier_forward.1} parent=1 // pred_region
      _
    $region21: #{classifier_forward.1} parent=1 // pred_fallthru
      _
    %v21 = vld [vmem:[%s0] sm:$0xff]
    %v22 = vld [vmem:[%s2] sm:$0xff]
    %v23 = vld [vmem:[%s2 + $0x8] sm:$0xff]
    %v24 = vld [vmem:[%s2 + $0x10] sm:$0xff]
    %v25 = vld [vmem:[%s2 + $0x18] sm:$0xff]
    %v26 = vld [vmem:[%s2 + $0x20] sm:$0xff]
    %v27 = vld [vmem:[%s2 + $0x28] sm:$0xff]
    %v28 = vld [vmem:[%s2 + $0x30] sm:$0xff]
    %v29 = vld [vmem:[%s2 + $0x38] sm:$0xff]
    %v30 = vld [vmem:[%s1] sm:$0xff]
    %vm31 = vcmask 523264
    %v33 = vsel %vm31, %v21, 0
    %35 = vmatpush.msra.mxu0 0.0
    %36 = vmatpush.msra.mxu0 0.0
    %37 = vmatpush.msra.mxu0 0.0
    %38 = vmatpush.msra.mxu0 0.0
    %39 = vmatpush.msra.mxu0 0.0
    %40 = vmatpush.msra.mxu0 0.0
    %41 = vmatpush.msra.mxu0 0.0
    %42 = vmatpush.msra.mxu0 0.0
    %43 = vmatpush.msra.mxu0 %v29
    %44 = vmatpush.msra.mxu0 %v28
    %45 = vmatpush.msra.mxu0 %v27
    %46 = vmatpush.msra.mxu0 %v26
    %47 = vmatpush.msra.mxu0 %v25
    %48 = vmatpush.msra.mxu0 %v24
    %49 = vmatpush.msra.mxu0 %v23
    %50 = vmatpush.msra.mxu0 %v22
    %51 = vmatmul.f32.gmra.mxu0 %v33
    %v52 = vpop.f32.mrf.mxu0
    %v53 = vadd.f32 %v30, %v52
    %54 = vdwg.mxu0
    %v55 = vmax.f32 %v53, 0.0
    %v56 = vld [vmem:[%s3] sm:$0xff]
    %v57 = vld [vmem:[%s3 + $0x8] sm:$0xff]
    %v58 = vld [vmem:[%s3 + $0x10] sm:$0xff]
    %v59 = vld [vmem:[%s3 + $0x18] sm:$0xff]
    %v60 = vld [vmem:[%s3 + $0x20] sm:$0xff]
    %v61 = vld [vmem:[%s3 + $0x28] sm:$0xff]
    %v62 = vld [vmem:[%s3 + $0x30] sm:$0xff]
    %v63 = vld [vmem:[%s3 + $0x38] sm:$0xff]
    %v64 = vld [vmem:[%s3 + $0x40] sm:$0xff]
    %v65 = vld [vmem:[%s3 + $0x48] sm:$0xff]
    %v66 = vld [vmem:[%s3 + $0x50] sm:$0xff]
    %v67 = vld [vmem:[%s3 + $0x58] sm:$0xff]
    %v68 = vld [vmem:[%s3 + $0x60] sm:$0xff]
    %v69 = vld [vmem:[%s3 + $0x68] sm:$0xff]
    %v70 = vld [vmem:[%s3 + $0x70] sm:$0xff]
    %v71 = vld [vmem:[%s3 + $0x78] sm:$0xff]
    %v72 = vld [vmem:[%s4] sm:$0x1]
    %v74 = vperm.slane %v72, 0
    %76 = vmatpush.msra.mxu0 %v71
    %77 = vmatpush.msra.mxu0 %v70
    %78 = vmatpush.msra.mxu0 %v69
    %79 = vmatpush.msra.mxu0 %v68
    %80 = vmatpush.msra.mxu0 %v67
    %81 = vmatpush.msra.mxu0 %v66
    %82 = vmatpush.msra.mxu0 %v65
    %83 = vmatpush.msra.mxu0 %v64
    %84 = vmatpush.msra.mxu0 %v63
    %85 = vmatpush.msra.mxu0 %v62
    %86 = vmatpush.msra.mxu0 %v61
    %87 = vmatpush.msra.mxu0 %v60
    %88 = vmatpush.msra.mxu0 %v59
    %89 = vmatpush.msra.mxu0 %v58
    %90 = vmatpush.msra.mxu0 %v57
    %91 = vmatpush.msra.mxu0 %v56
    %92 = vmatmul.f32.gmra.mxu0 %v55
    %v93 = vpop.f32.mrf.mxu0
    %v94 = vadd.f32 %v74, %v93
    %95 = vdwg.mxu0
    %96 = vst [vmem:[#allocation2] sm:$0xff] %v94
    // Predicated region
    $region22: #{classifier_forward.1} parent=1 // pred_check
      _
    $region23: #{classifier_forward.1} parent=1 // pred_check_branch
      %98 = sbr.rel (0) target = $region25
    $region24: #{classifier_forward.1} parent=1 // pred_region
      %100 = vsyncadd [#allocation3], 0
      %s102 = sshll.u32 [#allocation2], 4
      %s103 = int_to_ptr.vmem [resolvable:$true] %s102
      %s104 = sshll.u32 %s5, 4
      %s105 = int_to_ptr.hbm [resolvable:$true] %s104
      %107 = dma.vmem_to_hbm [thread:$0]  %s103, 128, %s105, [#allocation3]
    $region25: #{classifier_forward.1} parent=1 // pred_fallthru
      _
    // Predicated region
    $region26: #{classifier_forward.1} parent=1 // pred_check
      _
    $region27: #{classifier_forward.1} parent=1 // pred_check_branch
      %109 = sbr.rel (0) target = $region29
    $region28: #{classifier_forward.1} parent=1 // pred_region
      %111 = dma.done [#allocation3], 128
    $region29: #{classifier_forward.1} parent=1 // pred_fallthru
      _
    %112 = vsyncpa [#allocation3], 1

</llo_original>
